<compile_context>
chip_gen: v6e
topology: v6e:2x2x1
jax: 0.10.0
libtpu: 0.0.40
codegen_flags: <defaults>
</compile_context>

<pallas_src>
import math

import jax
import jax.numpy as jnp
from jax.experimental import pallas as pl
from jax.experimental.pallas import tpu as pltpu


_LANE = 128
_VMEM_SOFT_CAP = 48 * 1024 * 1024        # safe on v7x (64 MiB/TC); v5e/v6e have 128 MiB
_FOOTPRINT_BUDGET = 40 * 1024 * 1024     # target working-set for tiles/residency


def _round_up(x, m):
    return ((x + m - 1) // m) * m


def _pad2d(x, rows, cols):
    pr, pc = rows - x.shape[0], cols - x.shape[1]
    if pr or pc:
        x = jnp.pad(x, ((0, pr), (0, pc)))
    return x


def _choose_tile(dim, align, cap):
    """Largest tile <= cap (multiple of align); the full aligned dim if it fits.

    When tiling is needed, prefer a tile that divides the aligned dim exactly
    (down to cap/2) so wrapper-side padding stays a no-op where possible.
    """
    aligned = _round_up(dim, align)
    if aligned <= cap:
        return aligned
    t = cap
    while t >= max(align, cap // 2):
        if aligned % t == 0:
            return t
        t -= align
    return cap


def _make_mm_kernel(tk, b_resident, has_bias, cast_dtype):
    """Tiled matmul kernel: out = A @ B (+ bias), f32 accumulation in VMEM."""

    def kernel(*refs):
        if has_bias:
            a_ref, b_ref, bias_ref, o_ref, acc_ref = refs
        else:
            a_ref, b_ref, o_ref, acc_ref = refs
        k = pl.program_id(2)

        @pl.when(k == 0)
        def _init():
            if has_bias:
                # Initialize the accumulator with the broadcast bias -> no
                # extra VPU add in the finalize branch.
                acc_ref[...] = jnp.broadcast_to(
                    bias_ref[...].astype(jnp.float32), acc_ref.shape)
            else:
                acc_ref[...] = jnp.zeros_like(acc_ref)

        a = a_ref[...]
        if b_resident:
            # B holds the full (padded) K dim in VMEM; slice the current K tile.
            b = b_ref[pl.ds(pl.multiple_of(k * tk, tk), tk), :]
        else:
            b = b_ref[...]
        if cast_dtype is not None:
            # In-kernel cast (e.g. f32 -> bf16 operands): avoids a separate XLA
            # cast pass over the whole operand in HBM.
            a = a.astype(cast_dtype)
            b = b.astype(cast_dtype)

        acc_ref[...] += jnp.dot(a, b, preferred_element_type=jnp.float32)

        @pl.when(k == pl.num_programs(2) - 1)
        def _finalize():
            o_ref[...] = acc_ref[...].astype(o_ref.dtype)

    return kernel


def _tiled_matmul(a, b, bias=None, *, out_dtype, compute_dtype=None,
                  tm_max=512, tn_max=512, tk_max=1024):
    """out = a @ b (+ bias), tiled over (M, N, K) with an f32 VMEM accumulator."""
    M, K = a.shape
    K2, N = b.shape
    assert K == K2, (a.shape, b.shape)

    a_isz = jnp.dtype(a.dtype).itemsize
    b_isz = jnp.dtype(b.dtype).itemsize
    out_isz = jnp.dtype(out_dtype).itemsize

    # Cast only inside the kernel (and only if needed).
    cast_dtype = None
    if compute_dtype is not None and (a.dtype != compute_dtype
                                      or b.dtype != compute_dtype):
        cast_dtype = jnp.dtype(compute_dtype)

    eff_isz = (jnp.dtype(compute_dtype).itemsize if compute_dtype is not None
               else min(a_isz, b_isz))
    # Sublane packing: 8 rows for 4-byte, 16 for 2-byte, 32 for 1-byte dtypes.
    row_align = 8 * max(1, 4 // eff_isz)

    tm = _choose_tile(M, row_align, tm_max)
    tn = _choose_tile(N, _LANE, tn_max)
    tk = _choose_tile(K, _LANE, tk_max)

    # v7x has two TensorCores; make sure at least one "parallel" axis has >= 2
    # tiles for small graphs (otherwise one core idles).
    if (_round_up(M, tm) // tm) == 1 and (_round_up(N, tn) // tn) == 1 \
            and M >= 2 * row_align:
        tm = min(tm, _round_up(-(-M // 2), row_align))

    Mp, Np, Kp = _round_up(M, tm), _round_up(N, tn), _round_up(K, tk)
    ni, nj, nk = Mp // tm, Np // tn, Kp // tk
    has_bias = bias is not None

    # Keep B fully K-resident in VMEM when beneficial (reduction tiled, single
    # column tile) and the double-buffered footprint stays within budget.
    def _footprint(kb):
        f = (2 * tm * tk * a_isz        # A double-buffered
             + 2 * kb * tn * b_isz      # B double-buffered
             + 2 * tm * tn * out_isz    # out double-buffered
             + tm * tn * 4)             # f32 accumulator
        if has_bias:
            f += 2 * tn * 4
        return f

    b_resident = (nk > 1 and nj == 1 and _footprint(Kp) <= _FOOTPRINT_BUDGET)
    footprint = _footprint(Kp if b_resident else tk)
    vmem_limit = int(min(_VMEM_SOFT_CAP,
                         max(32 * 1024 * 1024, footprint * 5 // 4)))

    # Padding is a no-op when the dims are already tile-aligned.
    a_p = _pad2d(a, Mp, Kp)
    b_p = _pad2d(b, Kp, Np)

    in_specs = [
        pl.BlockSpec((tm, tk), lambda i, j, k: (i, k)),
        (pl.BlockSpec((Kp, tn), lambda i, j, k: (0, j)) if b_resident
         else pl.BlockSpec((tk, tn), lambda i, j, k: (k, j))),
    ]
    operands = [a_p, b_p]
    if has_bias:
        bias2d = _pad2d(bias.reshape(1, N).astype(jnp.float32), 1, Np)
        in_specs.append(pl.BlockSpec((1, tn), lambda i, j, k: (0, j)))
        operands.append(bias2d)

    kernel = _make_mm_kernel(tk, b_resident, has_bias, cast_dtype)

    # Truthful byte counts: A is re-read once per output-column tile; B is
    # re-read once per output-row tile unless it is VMEM-resident.
    a_bytes = Mp * Kp * a_isz * nj
    b_bytes = Kp * Np * b_isz * (1 if b_resident else ni)
    bytes_accessed = a_bytes + b_bytes + Mp * Np * out_isz
    if has_bias:
        bytes_accessed += Np * 4 * ni
    cost = pl.CostEstimate(flops=2 * Mp * Kp * Np, transcendentals=0,
                           bytes_accessed=int(bytes_accessed))

    out = pl.pallas_call(
        kernel,
        out_shape=jax.ShapeDtypeStruct((Mp, Np), out_dtype),
        grid_spec=pltpu.PrefetchScalarGridSpec(
            num_scalar_prefetch=0,
            grid=(ni, nj, nk),
            in_specs=in_specs,
            out_specs=pl.BlockSpec((tm, tn), lambda i, j, k: (i, j)),
            scratch_shapes=[pltpu.VMEM((tm, tn), jnp.float32)],
        ),
        compiler_params=pltpu.CompilerParams(
            dimension_semantics=("parallel", "parallel", "arbitrary"),
            vmem_limit_bytes=vmem_limit,
        ),
        cost_estimate=cost,
    )(*operands)

    if (Mp, Np) != (M, N):
        out = out[:M, :N]
    return out


def graph_convolution(x, weight, adj, bias=None, *, compute_dtype=None):
    """GCN layer forward: adj @ (x @ weight) + bias.

    compute_dtype=jnp.bfloat16 runs both matmuls with bf16 operands / f32
    accumulation (recommended on v6e/v7x where stage 2 is HBM-bound); the
    output stays in x.dtype. Default (None) keeps f32 operands.
    """
    n_nodes, in_features = x.shape
    assert weight.shape[0] == in_features
    assert adj.shape == (n_nodes, n_nodes)

    support_dtype = compute_dtype if compute_dtype is not None else x.dtype
    # Stage 1: support = X @ W — computed exactly once. W is tiny, so full
    # F_in / F_out tiles keep it VMEM-resident (grid collapses to (rows,1,1)).
    support = _tiled_matmul(x, weight, out_dtype=support_dtype,
                            compute_dtype=compute_dtype,
                            tm_max=512, tn_max=512, tk_max=2048)
    # Stage 2: out = adj @ support + bias — large tiles, bias fused into the
    # accumulator init, support kept K-resident when it fits.
    out = _tiled_matmul(adj, support, bias=bias, out_dtype=x.dtype,
                        compute_dtype=compute_dtype,
                        tm_max=512, tn_max=512, tk_max=1024)
    return out


def reference(x, weight, adj, bias):
    return adj @ (x @ weight) + bias[None, :]


if __name__ == "__main__":
    key = jax.random.PRNGKey(0)
    k_x, k_adj, k_w, k_b = jax.random.split(key, 4)

    n_nodes = 64
    in_features = 32
    out_features = 32

    # Deterministic parameter init matching reset_parameters():
    # uniform(-stdv, stdv) with stdv = 1/sqrt(out_features)
    stdv = 1.0 / math.sqrt(out_features)
    weight = jax.random.uniform(
        k_w, (in_features, out_features), jnp.float32, minval=-stdv, maxval=stdv
    )
    bias = jax.random.uniform(
        k_b, (out_features,), jnp.float32, minval=-stdv, maxval=stdv
    )

    # Example inputs: node features and a row-normalized dense adjacency.
    x = jax.random.normal(k_x, (n_nodes, in_features), jnp.float32)
    adj_raw = jax.random.uniform(k_adj, (n_nodes, n_nodes), jnp.float32)
    adj = adj_raw / jnp.sum(adj_raw, axis=-1, keepdims=True)

    ref = reference(x, weight, adj, bias)

    # f32-operand path (tolerance-equal to the PyTorch module).
    out_f32 = jax.block_until_ready(graph_convolution(x, weight, adj, bias))
    assert out_f32.shape == (n_nodes, out_features)
    assert jnp.allclose(out_f32, ref, atol=1e-4, rtol=1e-4), (
        f"f32 max abs err {jnp.max(jnp.abs(out_f32 - ref))}"
    )

    # bf16-operand / f32-accumulate path (MXU-peak + halved HBM on v6e/v7x).
    out_bf16 = jax.block_until_ready(
        graph_convolution(x, weight, adj, bias, compute_dtype=jnp.bfloat16)
    )
    assert out_bf16.shape == (n_nodes, out_features)
    assert jnp.allclose(out_bf16, ref, atol=5e-2, rtol=5e-2), (
        f"bf16 max abs err {jnp.max(jnp.abs(out_bf16 - ref))}"
    )

    print("KERNEL_OK")
</pallas_src>

<mosaic_0001>
module attributes {stable_mosaic.version = 11 : i64} {
  func.func @kernel(%arg0: i32, %arg1: i32, %arg2: i32, %arg3: memref<32x128xf32, #tpu.memory_space<vmem>>, %arg4: memref<128x128xf32, #tpu.memory_space<vmem>>, %arg5: memref<32x128xf32, #tpu.memory_space<vmem>>, %arg6: memref<32x128xf32, #tpu.memory_space<vmem>>) attributes {dimension_semantics = [#tpu.dimension_semantics<parallel>, #tpu.dimension_semantics<parallel>, #tpu.dimension_semantics<arbitrary>], iteration_bounds = array<i64: 2, 1, 1>, scalar_prefetch = 0 : i64, scratch_operands = 1 : i64, tpu.core_type = #tpu.core_type<tc>, window_params = [{transform_indices = @transform_0, window_bounds = array<i64: 32, 128>}, {transform_indices = @transform_1, window_bounds = array<i64: 128, 128>}, {transform_indices = @transform_2, window_bounds = array<i64: 32, 128>}]} {
    %c0_i32 = arith.constant 0 : i32
    %0 = arith.cmpi eq, %arg2, %c0_i32 : i32
    %1 = arith.extui %0 : i1 to i32
    %c0_i32_0 = arith.constant 0 : i32
    %2 = arith.cmpi ne, %1, %c0_i32_0 : i32
    scf.if %2 {
      %cst_10 = arith.constant 0.000000e+00 : f32
      %12 = vector.broadcast %cst_10 : f32 to vector<32x128xf32>
      %c0_11 = arith.constant 0 : index
      %c0_12 = arith.constant 0 : index
      %13 = vector.load %arg6[%c0_11, %c0_12] : memref<32x128xf32, #tpu.memory_space<vmem>>, vector<32x128xf32>
      tpu.vector_store %arg6[%c0_11, %c0_12], %12 {strides = array<i32>} : memref<32x128xf32, #tpu.memory_space<vmem>>, vector<32x128xf32>,
    } else {
    }
    %c0 = arith.constant 0 : index
    %c0_1 = arith.constant 0 : index
    %3 = vector.load %arg3[%c0, %c0_1] : memref<32x128xf32, #tpu.memory_space<vmem>>, vector<32x128xf32>
    %c0_2 = arith.constant 0 : index
    %c0_3 = arith.constant 0 : index
    %4 = vector.load %arg4[%c0_2, %c0_3] : memref<128x128xf32, #tpu.memory_space<vmem>>, vector<128x128xf32>
    %c0_4 = arith.constant 0 : index
    %c0_5 = arith.constant 0 : index
    %5 = vector.load %arg6[%c0_4, %c0_5] : memref<32x128xf32, #tpu.memory_space<vmem>>, vector<32x128xf32>
    %cst = arith.constant dense<0.000000e+00> : vector<32x128xf32>
    %6 = tpu.matmul %3, %4, %cst {dimension_numbers = #tpu.dot_dimension_numbers<[1], [0], [0], [1], [0, 0, 1, 1], [], []>} : vector<32x128xf32>, vector<128x128xf32>, vector<32x128xf32> -> vector<32x128xf32>
    %7 = arith.addf %5, %6 : vector<32x128xf32>
    %c0_6 = arith.constant 0 : index
    %c0_7 = arith.constant 0 : index
    %8 = vector.load %arg6[%c0_6, %c0_7] : memref<32x128xf32, #tpu.memory_space<vmem>>, vector<32x128xf32>
    tpu.vector_store %arg6[%c0_6, %c0_7], %7 {strides = array<i32>} : memref<32x128xf32, #tpu.memory_space<vmem>>, vector<32x128xf32>,
    %c0_i32_8 = arith.constant 0 : i32
    %9 = arith.cmpi eq, %arg2, %c0_i32_8 : i32
    %10 = arith.extui %9 : i1 to i32
    %c0_i32_9 = arith.constant 0 : i32
    %11 = arith.cmpi ne, %10, %c0_i32_9 : i32
    scf.if %11 {
      %c0_10 = arith.constant 0 : index
      %c0_11 = arith.constant 0 : index
      %12 = vector.load %arg6[%c0_10, %c0_11] : memref<32x128xf32, #tpu.memory_space<vmem>>, vector<32x128xf32>
      %c0_12 = arith.constant 0 : index
      %c0_13 = arith.constant 0 : index
      %13 = vector.load %arg5[%c0_12, %c0_13] : memref<32x128xf32, #tpu.memory_space<vmem>>, vector<32x128xf32>
      tpu.vector_store %arg5[%c0_12, %c0_13], %12 {strides = array<i32>} : memref<32x128xf32, #tpu.memory_space<vmem>>, vector<32x128xf32>,
    } else {
    }
    return
  }
  func.func @transform_0(%arg0: i32, %arg1: i32, %arg2: i32) -> (i32, i32) {
    %c0_i32 = arith.constant 0 : i32
    return %arg0, %arg2 : i32, i32
  }
  func.func @transform_1(%arg0: i32, %arg1: i32, %arg2: i32) -> (i32, i32) {
    %c0_i32 = arith.constant 0 : i32
    return %arg2, %arg1 : i32, i32
  }
  func.func @transform_2(%arg0: i32, %arg1: i32, %arg2: i32) -> (i32, i32) {
    %c0_i32 = arith.constant 0 : i32
    return %arg0, %arg1 : i32, i32
  }
}

</mosaic_0001>

<llo_original>
// kernel: tpu_custom_call.1
$region0: #{tpu_custom_call.1}
  #allocation0 [shape = 'u32[]', space=smem, size = 0x4, offset = 0x4, fixed_abs, tag = 'smem constant byte address 0x4 - core index']
  #allocation1 [shape = 'u32[144,128]{1,0:T(1,128)}', space=vmem, size = 0x12000, scoped, tag = 'internal scratch']
  #allocation2 [shape = 'f32[32,128]{1,0:T(8,128)}', space=vmem, size = 0x4000, scoped, tag = 'scratch operand']
  %s0 = inlined_call_operand.hbm [shape: f32[64,128], index: 0, kind: input, shape index: {}]
  %s1 = inlined_call_operand.hbm [shape: f32[128,128], index: 1, kind: input, shape index: {}]
  %s2 = inlined_call_operand.hbm [shape: f32[64,128], index: 2, kind: output, shape index: {}]
  %s3 = sld [smem:[#allocation0]]
  $region57: #{tpu_custom_call.1} parent=0
    _
  %s5 = ssub.s32 1, %s3
  %s6 = scalar_select 0, %s5, %s3
  $region1: #{tpu_custom_call.1} parent=0
    #allocation3 [shape = 'u8[32768]{0}', space=vmem, size = 0x8000, scoped, tag = 'input window, operand 0']
    #allocation4 [shape = 's32[2]{0}', space=sflag, size = 0x8, scoped, tag = 'scoped memory for tpu_custom_call.1']
    #allocation5 [shape = 's32[2]{0}', space=sflag, size = 0x8, scoped, tag = 'scoped memory for tpu_custom_call.1']
    #allocation6 [shape = 'u8[65536]{0}', space=vmem, size = 0x10000, scoped, tag = 'input window, operand 1, single buffered']
    #allocation7 [shape = 's32[1]{0}', space=sflag, size = 0x4, scoped, tag = 'scoped memory for tpu_custom_call.1']
    #allocation8 [shape = 'u8[32768]{0}', space=vmem, size = 0x8000, scoped, tag = 'output window, operand 0']
    %7 = vsyncpa [#allocation4], 0
    %s8 = scalar_lea.sflag [#allocation4], 1
    %9 = vsyncpa %s8, 0
    %10 = vsyncpa [#allocation7], 0
    %11 = vsyncpa [#allocation5], 0
    %s12 = scalar_lea.sflag [#allocation5], 1
    %13 = vsyncpa %s12, 0
    loop: start=0, step=1, limit=4
    $region2: #{tpu_custom_call.1} parent=1 // loop_pre_header
      _
    $region3: #{tpu_custom_call.1} parent=1 // loop_header
      %s15 = sphi 0, %s19
      %p16 = scmp.ge.s32.totalorder %s15, 4
      %s22 = sphi 0, %s41
      %s23 = sphi 0, %s37
      %s24 = sphi 0, %s33
      %s25 = sphi 0, %s22
      %s26 = sphi 0, %s23
      %s27 = sphi 0, %s24
      %s28 = sphi 0, %s25
      %s29 = sphi 0, %s26
      %s30 = sphi 0, %s27
      %s46 = sphi 0, %s48
      %s49 = sphi 0, %s46
      %s50 = sphi 0, %s49
      %s66 = sphi 0, %s50
      %s74 = sphi 0, %s76
      %s77 = sphi 0, %s74
      %s78 = sphi 0, %s77
      %s94 = sphi 0, %s78
      %s102 = sphi 0, %s104
      %s105 = sphi 0, %s102
      %s106 = sphi 0, %s105
      %s122 = sphi 0, %s106
    $region4: #{tpu_custom_call.1} parent=1 // loop_header_branch
      %18 = sbr.rel (%p16) target = $region8
    $region5: #{tpu_custom_call.1} parent=1 // loop_body
      %s20 = ssub.s32 %s15, 1
      %s21 = ssub.s32 %s15, 2
      %s31 = sadd.s32 1, %s24
      %p32 = scmp.ge.s32.totalorder %s31, 1
      %s33 = scalar_select %p32, 0, %s31
      %s34 = sadd.s32 1, %s23
      %s35 = scalar_select %p32, %s34, %s23
      %p36 = scmp.ge.s32.totalorder %s35, 1
      %s37 = scalar_select %p36, 0, %s35
      %s38 = sadd.s32 1, %s22
      %s39 = scalar_select %p36, %s38, %s22
      %p40 = scmp.ge.s32.totalorder %s39, 2
      %s41 = scalar_select %p40, 0, %s39
      %s42 = ssub.s32 %s22, %s41
      %s43 = ssub.s32 %s24, %s33
      %s44 = sor.u32 %s42, %s43
      %p45 = scmp.eq.s32.totalorder %s44, 0
      %s47 = sadd.s32 %s46, 1
      %s48 = scalar_select %p45, %s46, %s47
      %p51 = pneg %p45
      %p52 = scmp.eq.s32.totalorder %s15, 1
      %p53 = por %p51, %p52
      %p54 = scmp.ne.s32.totalorder %s46, %s49
      %p55 = scmp.eq.s32.totalorder %s15, 0
      %p56 = por %p54, %p55
      %p57 = scmp.ne.s32.totalorder %s46, %s49
      %p58 = scmp.eq.s32.totalorder %s20, 1
      %p59 = por %p57, %p58
      %p60 = scmp.ne.s32.totalorder %s49, %s50
      %p61 = scmp.eq.s32.totalorder %s20, 0
      %p62 = por %p60, %p61
      %p63 = scmp.ne.s32.totalorder %s49, %s50
      %p64 = scmp.eq.s32.totalorder %s21, 1
      %p65 = por %p63, %p64
      %p67 = scmp.ne.s32.totalorder %s50, %s66
      %p68 = scmp.eq.s32.totalorder %s21, 0
      %p69 = por %p67, %p68
      %s70 = ssub.s32 %s24, %s33
      %s71 = ssub.s32 %s23, %s37
      %s72 = sor.u32 %s70, %s71
      %p73 = scmp.eq.s32.totalorder %s72, 0
      %s75 = sadd.s32 %s74, 1
      %s76 = scalar_select %p73, %s74, %s75
      %p79 = pneg %p73
      %p80 = scmp.eq.s32.totalorder %s15, 1
      %p81 = por %p79, %p80
      %p82 = scmp.ne.s32.totalorder %s74, %s77
      %p83 = scmp.eq.s32.totalorder %s15, 0
      %p84 = por %p82, %p83
      %p85 = scmp.ne.s32.totalorder %s74, %s77
      %p86 = scmp.eq.s32.totalorder %s20, 1
      %p87 = por %p85, %p86
      %p88 = scmp.ne.s32.totalorder %s77, %s78
      %p89 = scmp.eq.s32.totalorder %s20, 0
      %p90 = por %p88, %p89
      %p91 = scmp.ne.s32.totalorder %s77, %s78
      %p92 = scmp.eq.s32.totalorder %s21, 1
      %p93 = por %p91, %p92
      %p95 = scmp.ne.s32.totalorder %s78, %s94
      %p96 = scmp.eq.s32.totalorder %s21, 0
      %p97 = por %p95, %p96
      %s98 = ssub.s32 %s22, %s41
      %s99 = ssub.s32 %s23, %s37
      %s100 = sor.u32 %s98, %s99
      %p101 = scmp.eq.s32.totalorder %s100, 0
      %s103 = sadd.s32 %s102, 1
      %s104 = scalar_select %p101, %s102, %s103
      %p107 = pneg %p101
      %p108 = scmp.eq.s32.totalorder %s15, 1
      %p109 = por %p107, %p108
      %p110 = scmp.ne.s32.totalorder %s102, %s105
      %p111 = scmp.eq.s32.totalorder %s15, 0
      %p112 = por %p110, %p111
      %p113 = scmp.ne.s32.totalorder %s102, %s105
      %p114 = scmp.eq.s32.totalorder %s20, 1
      %p115 = por %p113, %p114
      %p116 = scmp.ne.s32.totalorder %s105, %s106
      %p117 = scmp.eq.s32.totalorder %s20, 0
      %p118 = por %p116, %p117
      %p119 = scmp.ne.s32.totalorder %s105, %s106
      %p120 = scmp.eq.s32.totalorder %s21, 1
      %p121 = por %p119, %p120
      %p123 = scmp.ne.s32.totalorder %s106, %s122
      %p124 = scmp.eq.s32.totalorder %s21, 0
      %p125 = por %p123, %p124
      %p126 = scmp.le.s32.totalorder 1, %s15
      %p127 = scmp.lt.s32.totalorder %s15, 3
      %p128 = pnand %p126, %p127
      %p129 = pneg %p128
      // Predicated region
      $region9: #{tpu_custom_call.1} parent=5 // pred_check
        _
      $region10: #{tpu_custom_call.1} parent=5 // pred_check_branch
        %131 = sbr.rel (%p128) target = $region12
      $region11: #{tpu_custom_call.1} parent=5 // pred_region
        %s132 = ssub.s32 %s15, 1
        // Predicated region
        $region13: #{tpu_custom_call.1} parent=11 // pred_check
          %p133 = pneg %p90
        $region14: #{tpu_custom_call.1} parent=11 // pred_check_branch
          %135 = sbr.rel (%p133) target = $region16
        $region15: #{tpu_custom_call.1} parent=11 // pred_region
          %s136 = smul.u32 16, %s27
          %s138 = ssub.s32 2048, 2048
          %139 = vsyncadd [#allocation7], %s138
          %s140 = sadd.s32 %s26, %s136
          %s141 = smul.addr %s140, 128
          %s142 = scalar_lea.hbm %s1, %s141
          %s143 = sshll.u32 [#allocation6], 4
          %s144 = int_to_ptr.vmem [resolvable:$true] %s143
          %149 = dma.hbm_to_vmem [thread:$0]  %s142, 2048, %s144, [#allocation7], 128, 128, 8
        $region16: #{tpu_custom_call.1} parent=11 // pred_fallthru
          _
      $region12: #{tpu_custom_call.1} parent=5 // pred_fallthru
        _
      %p150 = scmp.lt.s32.totalorder %s15, 2
      // Predicated region
      $region17: #{tpu_custom_call.1} parent=5 // pred_check
        %p151 = pneg %p150
      $region18: #{tpu_custom_call.1} parent=5 // pred_check_branch
        %153 = sbr.rel (%p151) target = $region20
      $region19: #{tpu_custom_call.1} parent=5 // pred_region
        // Predicated region
        $region21: #{tpu_custom_call.1} parent=19 // pred_check
          %p154 = pneg %p56
        $region22: #{tpu_custom_call.1} parent=19 // pred_check_branch
          %156 = sbr.rel (%p154) target = $region24
        $region23: #{tpu_custom_call.1} parent=19 // pred_region
          %s157 = sand.u32 %s46, 1
          %s158 = scalar_lea.sflag [#allocation4], %s157
          %s159 = sand.u32 %s46, 1
          %s160 = smul.addr %s159, 32
          %s161 = scalar_lea.vmem [#allocation3], %s160
          %s162 = smul.u32 4, %s22
          %s164 = ssub.s32 512, 512
          %165 = vsyncadd %s158, %s164
          %s166 = sadd.s32 %s24, %s162
          %s167 = smul.addr %s166, 128
          %s168 = scalar_lea.hbm %s0, %s167
          %s169 = sshll.u32 %s161, 4
          %s170 = int_to_ptr.vmem [resolvable:$true] %s169
          %175 = dma.hbm_to_vmem [thread:$0]  %s168, 512, %s170, %s158, 128, 128, 8
        $region24: #{tpu_custom_call.1} parent=19 // pred_fallthru
          _
      $region20: #{tpu_custom_call.1} parent=5 // pred_fallthru
        _
      %p176 = scmp.le.s32.totalorder 1, %s15
      %p177 = scmp.lt.s32.totalorder %s15, 3
      %p178 = pnand %p176, %p177
      %p179 = pneg %p178
      // Predicated region
      $region25: #{tpu_custom_call.1} parent=5 // pred_check
        _
      $region26: #{tpu_custom_call.1} parent=5 // pred_check_branch
        %181 = sbr.rel (%p178) target = $region28
      $region27: #{tpu_custom_call.1} parent=5 // pred_region
        %s182 = ssub.s32 %s15, 1
        %s183 = sand.u32 %s49, 1
        %s184 = scalar_lea.sflag [#allocation4], %s183
        %s185 = sand.u32 %s49, 1
        %s186 = smul.addr %s185, 32
        %s187 = scalar_lea.vmem [#allocation3], %s186
        // Predicated region
        $region29: #{tpu_custom_call.1} parent=27 // pred_check
          %p188 = pneg %p62
        $region30: #{tpu_custom_call.1} parent=27 // pred_check_branch
          %190 = sbr.rel (%p188) target = $region32
        $region31: #{tpu_custom_call.1} parent=27 // pred_region
          %191 = dma.done %s184, 512
        $region32: #{tpu_custom_call.1} parent=27 // pred_fallthru
          _
        // Predicated region
        $region33: #{tpu_custom_call.1} parent=27 // pred_check
          %p192 = pneg %p90
        $region34: #{tpu_custom_call.1} parent=27 // pred_check_branch
          %194 = sbr.rel (%p192) target = $region36
        $region35: #{tpu_custom_call.1} parent=27 // pred_region
          %195 = dma.done [#allocation7], 2048
        $region36: #{tpu_custom_call.1} parent=27 // pred_fallthru
          _
        %s196 = sand.u32 %s49, 1
        %s197 = scalar_lea.sflag [#allocation4], %s196
        %s198 = sand.u32 %s49, 1
        %s199 = smul.addr %s198, 32
        %s200 = scalar_lea.vmem [#allocation3], %s199
        %p201 = pneg %p62
        %p202 = pneg %p59
        %p203 = pneg %p90
        %p204 = pneg %p87
        %p205 = pneg %p118
        %p206 = pneg %p115
        %s207 = sand.u32 %s105, 1
        %s208 = scalar_lea.sflag [#allocation5], %s207
        %s209 = sand.u32 %s105, 1
        %s210 = smul.addr %s209, 32
        %s211 = scalar_lea.vmem [#allocation8], %s210
        %s212 = smul.u32 4, %s25
        %s213 = smul.u32 16, %s27
        %s214 = smul.u32 4, %s25
        %p215 = scmp.eq.s32.totalorder %s27, 0
        // Predicated region
        $region37: #{tpu_custom_call.1} parent=27 // pred_check
          %p216 = pneg %p215
        $region38: #{tpu_custom_call.1} parent=27 // pred_check_branch
          %218 = sbr.rel (%p216) target = $region40
        $region39: #{tpu_custom_call.1} parent=27 // pred_region
          %219 = vst [vmem:[#allocation2] sm:$0xff] 0.0
          %220 = vst [vmem:[#allocation2 + $0x8] sm:$0xff] 0.0
          %221 = vst [vmem:[#allocation2 + $0x10] sm:$0xff] 0.0
          %222 = vst [vmem:[#allocation2 + $0x18] sm:$0xff] 0.0
        $region40: #{tpu_custom_call.1} parent=27 // pred_fallthru
          _
        %v223 = vld [vmem:[%s187] sm:$0xff]
        %v224 = vld [vmem:[%s187 + $0x8] sm:$0xff]
        %v225 = vld [vmem:[%s187 + $0x10] sm:$0xff]
        %v226 = vld [vmem:[%s187 + $0x18] sm:$0xff]
        %v227 = vld [vmem:[#allocation6] sm:$0xff]
        %v228 = vld [vmem:[#allocation6 + $0x8] sm:$0xff]
        %v229 = vld [vmem:[#allocation6 + $0x10] sm:$0xff]
        %v230 = vld [vmem:[#allocation6 + $0x18] sm:$0xff]
        %v231 = vld [vmem:[#allocation6 + $0x20] sm:$0xff]
        %v232 = vld [vmem:[#allocation6 + $0x28] sm:$0xff]
        %v233 = vld [vmem:[#allocation6 + $0x30] sm:$0xff]
        %v234 = vld [vmem:[#allocation6 + $0x38] sm:$0xff]
        %v235 = vld [vmem:[#allocation6 + $0x40] sm:$0xff]
        %v236 = vld [vmem:[#allocation6 + $0x48] sm:$0xff]
        %v237 = vld [vmem:[#allocation6 + $0x50] sm:$0xff]
        %v238 = vld [vmem:[#allocation6 + $0x58] sm:$0xff]
        %v239 = vld [vmem:[#allocation6 + $0x60] sm:$0xff]
        %v240 = vld [vmem:[#allocation6 + $0x68] sm:$0xff]
        %v241 = vld [vmem:[#allocation6 + $0x70] sm:$0xff]
        %v242 = vld [vmem:[#allocation6 + $0x78] sm:$0xff]
        %v243 = vld [vmem:[#allocation2] sm:$0xff]
        %v244 = vld [vmem:[#allocation2 + $0x8] sm:$0xff]
        %v245 = vld [vmem:[#allocation2 + $0x10] sm:$0xff]
        %v246 = vld [vmem:[#allocation2 + $0x18] sm:$0xff]
        %247 = vmatprep.subr.mxu0 0.0
        %248 = vmatpush1.msra.mxu0 %v242
        %249 = vmatprep.subr.mxu0 0.0
        %250 = vmatpush1.msra.mxu0 %v241
        %251 = vmatprep.subr.mxu0 0.0
        %252 = vmatpush1.msra.mxu0 %v240
        %253 = vmatprep.subr.mxu0 0.0
        %254 = vmatpush1.msra.mxu0 %v239
        %255 = vmatprep.subr.mxu0 0.0
        %256 = vmatpush1.msra.mxu0 %v238
        %257 = vmatprep.subr.mxu0 0.0
        %258 = vmatpush1.msra.mxu0 %v237
        %259 = vmatprep.subr.mxu0 0.0
        %260 = vmatpush1.msra.mxu0 %v236
        %261 = vmatprep.subr.mxu0 0.0
        %262 = vmatpush1.msra.mxu0 %v235
        %263 = vmatprep.subr.mxu0 0.0
        %264 = vmatpush1.msra.mxu0 %v234
        %265 = vmatprep.subr.mxu0 0.0
        %266 = vmatpush1.msra.mxu0 %v233
        %267 = vmatprep.subr.mxu0 0.0
        %268 = vmatpush1.msra.mxu0 %v232
        %269 = vmatprep.subr.mxu0 0.0
        %270 = vmatpush1.msra.mxu0 %v231
        %271 = vmatprep.subr.mxu0 0.0
        %272 = vmatpush1.msra.mxu0 %v230
        %273 = vmatprep.subr.mxu0 0.0
        %274 = vmatpush1.msra.mxu0 %v229
        %275 = vmatprep.subr.mxu0 0.0
        %276 = vmatpush1.msra.mxu0 %v228
        %277 = vmatprep.subr.mxu0 0.0
        %278 = vmatpush1.msra.mxu0 %v227
        %279 = vmatprep.subr.mxu0 0.0
        %280 = vmatpush2.msra.mxu0 0.0
        %281 = vmatprep.subr.mxu0 0.0
        %282 = vmatpush2.msra.mxu0 0.0
        %283 = vmatprep.subr.mxu0 0.0
        %284 = vmatpush2.msra.mxu0 0.0
        %285 = vmatprep.subr.mxu0 0.0
        %286 = vmatpush2.msra.mxu0 0.0
        %287 = vmatprep.subr.mxu0 0.0
        %288 = vmatpush2.msra.mxu0 0.0
        %289 = vmatprep.subr.mxu0 0.0
        %290 = vmatpush2.msra.mxu0 0.0
        %291 = vmatprep.subr.mxu0 0.0
        %292 = vmatpush2.msra.mxu0 0.0
        %293 = vmatprep.subr.mxu0 0.0
        %294 = vmatpush2.msra.mxu0 0.0
        %295 = vmatprep.subr.mxu0 0.0
        %296 = vmatpush2.msra.mxu0 0.0
        %297 = vmatprep.subr.mxu0 0.0
        %298 = vmatpush2.msra.mxu0 0.0
        %299 = vmatprep.subr.mxu0 0.0
        %300 = vmatpush2.msra.mxu0 0.0
        %301 = vmatprep.subr.mxu0 0.0
        %302 = vmatpush2.msra.mxu0 0.0
        %303 = vmatprep.subr.mxu0 0.0
        %304 = vmatpush2.msra.mxu0 0.0
        %305 = vmatprep.subr.mxu0 0.0
        %306 = vmatpush2.msra.mxu0 0.0
        %307 = vmatprep.subr.mxu0 0.0
        %308 = vmatpush2.msra.mxu0 0.0
        %309 = vmatprep.subr.mxu0 0.0
        %310 = vmatpush2.msra.mxu0 0.0
        %311 = vmatprep.mubr.f32.mxu0 0.0
        %312 = vmatmul.mubr.f32.gmra.mxu0 %v223
        %v313 = vpop.f32.mrf.mxu0
        %v314 = vadd.f32 0.0, %v313
        %v315 = vpop.f32.mrf.mxu0
        %316 = vmatprep.mubr.f32.mxu0 0.0
        %317 = vmatmul.mubr.f32.gmra.mxu0 %v224
        %v318 = vpop.f32.mrf.mxu0
        %v319 = vadd.f32 0.0, %v318
        %v320 = vpop.f32.mrf.mxu0
        %321 = vmatprep.mubr.f32.mxu0 0.0
        %322 = vmatmul.mubr.f32.gmra.mxu0 %v225
        %v323 = vpop.f32.mrf.mxu0
        %v324 = vadd.f32 0.0, %v323
        %v325 = vpop.f32.mrf.mxu0
        %326 = vmatprep.mubr.f32.mxu0 0.0
        %327 = vmatmul.mubr.f32.gmra.mxu0 %v226
        %v328 = vpop.f32.mrf.mxu0
        %v329 = vadd.f32 0.0, %v328
        %v330 = vpop.f32.mrf.mxu0
        %331 = vdwg.mxu0
        %v332 = vadd.f32 %v243, %v314
        %v333 = vadd.f32 %v244, %v319
        %v334 = vadd.f32 %v245, %v324
        %v335 = vadd.f32 %v246, %v329
        %336 = vst [vmem:[#allocation2] sm:$0xff] %v332
        %337 = vst [vmem:[#allocation2 + $0x8] sm:$0xff] %v333
        %338 = vst [vmem:[#allocation2 + $0x10] sm:$0xff] %v334
        %339 = vst [vmem:[#allocation2 + $0x18] sm:$0xff] %v335
        // Predicated region
        $region41: #{tpu_custom_call.1} parent=27 // pred_check
          %p340 = pneg %p215
        $region42: #{tpu_custom_call.1} parent=27 // pred_check_branch
          %342 = sbr.rel (%p340) target = $region44
        $region43: #{tpu_custom_call.1} parent=27 // pred_region
          %v343 = vld [vmem:[#allocation2] sm:$0xff]
          %v344 = vld [vmem:[#allocation2 + $0x8] sm:$0xff]
          %v345 = vld [vmem:[#allocation2 + $0x10] sm:$0xff]
          %v346 = vld [vmem:[#allocation2 + $0x18] sm:$0xff]
          %347 = vst [vmem:[%s211] sm:$0xff] %v343
          %348 = vst [vmem:[%s211 + $0x8] sm:$0xff] %v344
          %349 = vst [vmem:[%s211 + $0x10] sm:$0xff] %v345
          %350 = vst [vmem:[%s211 + $0x18] sm:$0xff] %v346
        $region44: #{tpu_custom_call.1} parent=27 // pred_fallthru
          _
        %s351 = sand.u32 %s105, 1
        %s352 = scalar_lea.sflag [#allocation5], %s351
        %s353 = sand.u32 %s105, 1
        %s354 = smul.addr %s353, 32
        %s355 = scalar_lea.vmem [#allocation8], %s354
        // Predicated region
        $region45: #{tpu_custom_call.1} parent=27 // pred_check
          %p356 = pneg %p115
        $region46: #{tpu_custom_call.1} parent=27 // pred_check_branch
          %358 = sbr.rel (%p356) target = $region48
        $region47: #{tpu_custom_call.1} parent=27 // pred_region
          %s359 = smul.u32 4, %s25
          %s361 = ssub.s32 512, 512
          %362 = vsyncadd %s352, %s361
          %s363 = sadd.s32 %s26, %s359
          %s364 = smul.addr %s363, 128
          %s365 = scalar_lea.hbm %s2, %s364
          %s366 = sshll.u32 %s355, 4
          %s367 = int_to_ptr.vmem [resolvable:$true] %s366
          %372 = dma.vmem_to_hbm [thread:$0]  %s367, 512, %s365, %s352, 128, 128, 8
        $region48: #{tpu_custom_call.1} parent=27 // pred_fallthru
          _
      $region28: #{tpu_custom_call.1} parent=5 // pred_fallthru
        _
      %p373 = scmp.le.s32.totalorder 2, %s15
      // Predicated region
      $region49: #{tpu_custom_call.1} parent=5 // pred_check
        %p374 = pneg %p373
      $region50: #{tpu_custom_call.1} parent=5 // pred_check_branch
        %376 = sbr.rel (%p374) target = $region52
      $region51: #{tpu_custom_call.1} parent=5 // pred_region
        %s377 = ssub.s32 %s15, 2
        // Predicated region
        $region53: #{tpu_custom_call.1} parent=51 // pred_check
          %p378 = pneg %p121
        $region54: #{tpu_custom_call.1} parent=51 // pred_check_branch
          %380 = sbr.rel (%p378) target = $region56
        $region55: #{tpu_custom_call.1} parent=51 // pred_region
          %s381 = sand.u32 %s106, 1
          %s382 = scalar_lea.sflag [#allocation5], %s381
          %s383 = sand.u32 %s106, 1
          %s384 = smul.addr %s383, 32
          %s385 = scalar_lea.vmem [#allocation8], %s384
          %386 = dma.done %s382, 512
        $region56: #{tpu_custom_call.1} parent=51 // pred_fallthru
          _
      $region52: #{tpu_custom_call.1} parent=5 // pred_fallthru
        _
    $region6: #{tpu_custom_call.1} parent=1 // loop_footer
      %s19 = sadd.s32 1, %s15
    $region7: #{tpu_custom_call.1} parent=1 // loop_footer_branch
      %14 = sbr.rel target = $region3
    $region8: #{tpu_custom_call.1} parent=1 // loop_exit
      _
    %387 = vsyncpa [#allocation4], 1
    %s388 = scalar_lea.sflag [#allocation4], 1
    %389 = vsyncpa %s388, 1
    %390 = vsyncpa [#allocation7], 1
    %391 = vsyncpa [#allocation5], 1
    %s392 = scalar_lea.sflag [#allocation5], 1
    %393 = vsyncpa %s392, 1

</llo_original>
